<compile_context>
chip_gen: v5e
topology: v5e:2x2
jax: 0.10.0
libtpu: 0.0.40
codegen_flags: <defaults>
</compile_context>

<pallas_src>
import jax
import jax.numpy as jnp
from jax.experimental import pallas as pl
from jax.experimental.pallas import tpu as pltpu


def _round_up(n: int, m: int) -> int:
    return (n + m - 1) // m * m


def _pad2d(a, rows, cols):
    r, c = a.shape
    return jnp.pad(a, ((0, rows - r), (0, cols - c)))


# --------------------------------------------------------------------------
# Kernels
# --------------------------------------------------------------------------
def _gru_cell_kernel(
    x_ref,      # [Bp, Ep]    bf16  embedded tokens (dropout = identity, eval)
    h_ref,      # [Bp, Hp]    f32   previous hidden state
    wi_ref,     # [Ep, 3*Hp]  bf16  fused [W_ir | W_iz | W_in]
    wh_ref,     # [Hp, 3*Hp]  bf16  fused [W_hr | W_hz | W_hn]
    bi_ref,     # [1, 3*Hp]   f32   fused [b_ir+b_hr | b_iz+b_hz | b_in]
    bhn_ref,    # [1, Hp]     f32   b_hn (gated by r, cannot be folded)
    hnew_ref,   # [Bp, Hp]    f32   OUT: new hidden state
    hbf_ref,    # [Bp, Hp]    bf16  OUT: new hidden state for the projection
):
    Hp = h_ref.shape[1]
    h = h_ref[...]
    # Two fused MXU matmuls instead of six (bf16 inputs, f32 accumulate).
    gi = jnp.dot(x_ref[...], wi_ref[...],
                 preferred_element_type=jnp.float32) + bi_ref[...]
    gh = jnp.dot(h.astype(jnp.bfloat16), wh_ref[...],
                 preferred_element_type=jnp.float32)
    # PyTorch GRU cell semantics:
    #   r = sigmoid(W_ir x + b_ir + W_hr h + b_hr)
    #   z = sigmoid(W_iz x + b_iz + W_hz h + b_hz)
    #   n = tanh  (W_in x + b_in + r * (W_hn h + b_hn))
    #   h' = (1 - z) * n + z * h
    r = jax.nn.sigmoid(gi[:, 0 * Hp:1 * Hp] + gh[:, 0 * Hp:1 * Hp])
    z = jax.nn.sigmoid(gi[:, 1 * Hp:2 * Hp] + gh[:, 1 * Hp:2 * Hp])
    n = jnp.tanh(gi[:, 2 * Hp:3 * Hp] + r * (gh[:, 2 * Hp:3 * Hp] + bhn_ref[...]))
    h_new = n + z * (h - n)                     # == (1 - z) * n + z * h
    hnew_ref[...] = h_new
    hbf_ref[...] = h_new.astype(jnp.bfloat16)


def _fc_out_kernel(
    hbf_ref,    # [Bp, Hp]    bf16  new hidden (V-invariant, resident)
    bout_ref,   # [nV, tv]    f32   all fc_out bias tiles (V-invariant, resident)
    wout_ref,   # [Hp, tv]    bf16  pre-tiled contiguous w_out slab (streamed)
    pred_ref,   # [Bp, tv]    f32   OUT: logits slab
):
    j = pl.program_id(0)
    bias = bout_ref[pl.ds(j, 1), :]             # [1, tv], no per-step DMA
    pred_ref[...] = (
        jnp.dot(hbf_ref[...], wout_ref[...], preferred_element_type=jnp.float32)
        + bias
    )


# --------------------------------------------------------------------------
# Parameter packing
# --------------------------------------------------------------------------
def _choose_tv(Hp, V, budget_bytes, nominal_batch=64):
    """Largest fc_out tile width (multiple of 128) fitting the VMEM budget."""
    vmin = _round_up(V, 128)
    for tv in (2048, 1024, 512, 256, 128):
        Vp = _round_up(V, tv)
        if Vp > 2 * vmin:                   # avoid pathological padding
            continue
        need = (2 * Hp * tv * 2             # double-buffered w_out slab (bf16)
                + 2 * nominal_batch * tv * 4    # double-buffered pred slab (f32)
                + 2 * nominal_batch * Hp * 2    # resident h_bf
                + 2 * Vp * 4)                   # resident b_out
        if need <= budget_bytes:
            return tv
    return 128


def pack_params(params, *, tv=None, lane=128, vmem_budget_bytes=32 << 20):
    """Fuse / fold / pad / pre-tile / bf16-cast PyTorch-layout params."""
    E = params["embedding"].shape[1]
    H = params["w_hr"].shape[0]
    V = params["w_out"].shape[1]
    Ep, Hp = _round_up(E, lane), _round_up(H, lane)
    if tv is None:
        tv = _choose_tv(Hp, V, vmem_budget_bytes)
    assert tv % lane == 0
    Vp = _round_up(V, tv)
    nV = Vp // tv

    w_i = jnp.concatenate(
        [_pad2d(params["w_ir"], Ep, Hp),
         _pad2d(params["w_iz"], Ep, Hp),
         _pad2d(params["w_in"], Ep, Hp)], axis=1).astype(jnp.bfloat16)
    w_h = jnp.concatenate(
        [_pad2d(params["w_hr"], Hp, Hp),
         _pad2d(params["w_hz"], Hp, Hp),
         _pad2d(params["w_hn"], Hp, Hp)], axis=1).astype(jnp.bfloat16)
    b_i = jnp.concatenate(
        [_pad2d(params["b_ir"] + params["b_hr"], 1, Hp),
         _pad2d(params["b_iz"] + params["b_hz"], 1, Hp),
         _pad2d(params["b_in"], 1, Hp)], axis=1).astype(jnp.float32)
    b_hn = _pad2d(params["b_hn"], 1, Hp).astype(jnp.float32)

    # Pre-tiled, contiguous w_out: [nV, Hp, tv]; one burst DMA per grid step.
    w_out = _pad2d(params["w_out"], Hp, Vp).astype(jnp.bfloat16)
    w_out = w_out.reshape(Hp, nV, tv).transpose(1, 0, 2)
    b_out = _pad2d(params["b_out"], 1, Vp).astype(jnp.float32).reshape(nV, tv)

    packed = {
        "embedding": params["embedding"],   # gathered in plain JAX glue
        "w_i": w_i, "w_h": w_h, "b_i": b_i, "b_hn": b_hn,
        "w_out": w_out, "b_out": b_out,
    }
    dims = dict(E=E, H=H, V=V, Ep=Ep, Hp=Hp, Vp=Vp, tv=tv, nV=nV)
    return packed, dims


# --------------------------------------------------------------------------
# Forward
# --------------------------------------------------------------------------
def answer_decoder_forward(tokens, hidden, packed, dims):
    """Equivalent of AnswerDecoder.forward (eval mode).

    tokens : [B] int32
    hidden : [1, B, H] float32
    returns (prediction [B, V] float32, hidden [1, B, H] float32)
    """
    E, H, V = dims["E"], dims["H"], dims["V"]
    Ep, Hp, Vp, tv, nV = dims["Ep"], dims["Hp"], dims["Vp"], dims["tv"], dims["nV"]
    B = tokens.shape[0]
    Bp = _round_up(B, 16)        # bf16 packs two rows per sublane -> pad to 16

    # Glue: embedding gather + dropout (identity in eval) + padding.
    x = packed["embedding"][tokens].astype(jnp.bfloat16)        # [B, E]
    x = _pad2d(x, Bp, Ep)                                       # [Bp, Ep]
    h0 = _pad2d(hidden[0].astype(jnp.float32), Bp, Hp)          # [Bp, Hp]

    # ---- (1) GRU cell: single invocation, weights never double-buffered ----
    gru_bytes = ((Ep + Hp) * 3 * Hp * 2 + Bp * Ep * 2 + Bp * Hp * 4
                 + 3 * Hp * 4 + Hp * 4 + Bp * Hp * (4 + 2))
    inv1 = lambda i: (0, 0)
    h_new_p, h_bf = pl.pallas_call(
        _gru_cell_kernel,
        out_shape=(
            jax.ShapeDtypeStruct((Bp, Hp), jnp.float32),
            jax.ShapeDtypeStruct((Bp, Hp), jnp.bfloat16),
        ),
        grid=(1,),
        in_specs=[
            pl.BlockSpec((Bp, Ep), inv1),          # x
            pl.BlockSpec((Bp, Hp), inv1),          # h
            pl.BlockSpec((Ep, 3 * Hp), inv1),      # W_i fused
            pl.BlockSpec((Hp, 3 * Hp), inv1),      # W_h fused
            pl.BlockSpec((1, 3 * Hp), inv1),       # b_i fused (+ folded b_hr/b_hz)
            pl.BlockSpec((1, Hp), inv1),           # b_hn
        ],
        out_specs=(
            pl.BlockSpec((Bp, Hp), inv1),
            pl.BlockSpec((Bp, Hp), inv1),
        ),
        compiler_params=pltpu.CompilerParams(
            dimension_semantics=("arbitrary",),
            vmem_limit_bytes=min(max(2 * gru_bytes + (4 << 20), 16 << 20), 48 << 20),
        ),
        cost_estimate=pl.CostEstimate(
            flops=2 * Bp * (Ep + Hp) * 3 * Hp,
            transcendentals=3 * Bp * Hp,
            bytes_accessed=gru_bytes,
        ),
    )(x, h0, packed["w_i"], packed["w_h"], packed["b_i"], packed["b_hn"])

    # ---- (2) fc_out projection: V-tiled, fully parallel grid axis ----------
    fc_vmem = (2 * Hp * tv * 2          # double-buffered w_out slabs (bf16)
               + 2 * Bp * tv * 4        # double-buffered pred slabs (f32)
               + 2 * Bp * Hp * 2        # resident h_bf
               + 2 * nV * tv * 4)       # resident b_out
    pred_p = pl.pallas_call(
        _fc_out_kernel,
        out_shape=jax.ShapeDtypeStruct((Bp, Vp), jnp.float32),
        grid=(nV,),
        in_specs=[
            pl.BlockSpec((Bp, Hp), lambda j: (0, 0)),        # h_bf (resident)
            pl.BlockSpec((nV, tv), lambda j: (0, 0)),        # b_out (resident)
            pl.BlockSpec((None, Hp, tv), lambda j: (j, 0, 0)),  # w_out slab
        ],
        out_specs=pl.BlockSpec((Bp, tv), lambda j: (0, j)),
        compiler_params=pltpu.CompilerParams(
            # Every V tile is independent -> can shard across v7x's 2 TCs.
            dimension_semantics=("parallel",),
            vmem_limit_bytes=min(max(fc_vmem + (4 << 20), 32 << 20), 48 << 20),
        ),
        cost_estimate=pl.CostEstimate(
            flops=2 * Bp * Hp * Vp,
            transcendentals=0,
            bytes_accessed=Hp * Vp * 2 + Bp * Hp * 2 + Vp * 4 + Bp * Vp * 4,
        ),
    )(h_bf, packed["b_out"], packed["w_out"])

    prediction = pred_p[:B, :V]
    h_new = h_new_p[:B, :H]
    return prediction, h_new[None, :, :]


# --------------------------------------------------------------------------
# Params init (PyTorch-layout-equivalent; weights stored transposed [in, out])
# --------------------------------------------------------------------------
def init_params(key, output_dim, emb_dim, hid_dim):
    ks = jax.random.split(key, 16)
    s = 0.1
    return {
        "embedding": jax.random.normal(ks[0], (output_dim, emb_dim), jnp.float32) * s,
        "w_ir": jax.random.normal(ks[1], (emb_dim, hid_dim), jnp.float32) * s,
        "w_iz": jax.random.normal(ks[2], (emb_dim, hid_dim), jnp.float32) * s,
        "w_in": jax.random.normal(ks[3], (emb_dim, hid_dim), jnp.float32) * s,
        "w_hr": jax.random.normal(ks[4], (hid_dim, hid_dim), jnp.float32) * s,
        "w_hz": jax.random.normal(ks[5], (hid_dim, hid_dim), jnp.float32) * s,
        "w_hn": jax.random.normal(ks[6], (hid_dim, hid_dim), jnp.float32) * s,
        "b_ir": jax.random.normal(ks[7], (1, hid_dim), jnp.float32) * s,
        "b_iz": jax.random.normal(ks[8], (1, hid_dim), jnp.float32) * s,
        "b_in": jax.random.normal(ks[9], (1, hid_dim), jnp.float32) * s,
        "b_hr": jax.random.normal(ks[10], (1, hid_dim), jnp.float32) * s,
        "b_hz": jax.random.normal(ks[11], (1, hid_dim), jnp.float32) * s,
        "b_hn": jax.random.normal(ks[12], (1, hid_dim), jnp.float32) * s,
        "w_out": jax.random.normal(ks[13], (hid_dim, output_dim), jnp.float32) * s,
        "b_out": jax.random.normal(ks[14], (1, output_dim), jnp.float32) * s,
    }


if __name__ == "__main__":
    OUTPUT_DIM = 300   # vocab size (auto tv=512 -> one contiguous fc_out tile)
    EMB_DIM = 16
    HID_DIM = 32
    BATCH = 4

    key = jax.random.PRNGKey(0)
    k_params, k_tok, k_hid = jax.random.split(key, 3)

    params = init_params(k_params, OUTPUT_DIM, EMB_DIM, HID_DIM)
    tokens = jax.random.randint(k_tok, (BATCH,), 0, OUTPUT_DIM, dtype=jnp.int32)
    hidden = jax.random.normal(k_hid, (1, BATCH, HID_DIM), jnp.float32)

    packed, dims = pack_params(params)
    prediction, new_hidden = answer_decoder_forward(tokens, hidden, packed, dims)
    jax.block_until_ready((prediction, new_hidden))

    assert prediction.shape == (BATCH, OUTPUT_DIM)
    assert new_hidden.shape == (1, BATCH, HID_DIM)

    # Pure-JAX reference with the same bf16 weight/activation precision.
    def mm(a, w):
        return jnp.dot(a.astype(jnp.bfloat16), w.astype(jnp.bfloat16),
                       preferred_element_type=jnp.float32)

    x = params["embedding"][tokens]
    h = hidden[0]
    r = jax.nn.sigmoid(mm(x, params["w_ir"]) + params["b_ir"]
                       + mm(h, params["w_hr"]) + params["b_hr"])
    z = jax.nn.sigmoid(mm(x, params["w_iz"]) + params["b_iz"]
                       + mm(h, params["w_hz"]) + params["b_hz"])
    n = jnp.tanh(mm(x, params["w_in"]) + params["b_in"]
                 + r * (mm(h, params["w_hn"]) + params["b_hn"]))
    h_ref = (1.0 - z) * n + z * h
    pred_ref = mm(h_ref, params["w_out"]) + params["b_out"]

    assert jnp.allclose(prediction, pred_ref, atol=2e-2, rtol=2e-2)
    assert jnp.allclose(new_hidden[0], h_ref, atol=2e-2, rtol=2e-2)

    print("KERNEL_OK")
</pallas_src>

<mosaic_0001>
module attributes {stable_mosaic.version = 11 : i64} {
  func.func @_gru_cell_kernel(%arg0: i32, %arg1: memref<16x128xbf16, #tpu.memory_space<vmem>>, %arg2: memref<16x128xf32, #tpu.memory_space<vmem>>, %arg3: memref<128x384xbf16, #tpu.memory_space<vmem>>, %arg4: memref<128x384xbf16, #tpu.memory_space<vmem>>, %arg5: memref<1x384xf32, #tpu.memory_space<vmem>>, %arg6: memref<1x128xf32, #tpu.memory_space<vmem>>, %arg7: memref<16x128xf32, #tpu.memory_space<vmem>>, %arg8: memref<16x128xbf16, #tpu.memory_space<vmem>>) attributes {dimension_semantics = [#tpu.dimension_semantics<arbitrary>], iteration_bounds = array<i64: 1>, scalar_prefetch = 0 : i64, scratch_operands = 0 : i64, tpu.core_type = #tpu.core_type<tc>, window_params = [{pipeline_mode = #tpu.pipeline_mode<synchronous>, transform_indices = @transform_0, window_bounds = array<i64: 16, 128>}, {pipeline_mode = #tpu.pipeline_mode<synchronous>, transform_indices = @transform_1, window_bounds = array<i64: 16, 128>}, {pipeline_mode = #tpu.pipeline_mode<synchronous>, transform_indices = @transform_2, window_bounds = array<i64: 128, 384>}, {pipeline_mode = #tpu.pipeline_mode<synchronous>, transform_indices = @transform_3, window_bounds = array<i64: 128, 384>}, {pipeline_mode = #tpu.pipeline_mode<synchronous>, transform_indices = @transform_4, window_bounds = array<i64: 1, 384>}, {pipeline_mode = #tpu.pipeline_mode<synchronous>, transform_indices = @transform_5, window_bounds = array<i64: 1, 128>}, {pipeline_mode = #tpu.pipeline_mode<synchronous>, transform_indices = @transform_6, window_bounds = array<i64: 16, 128>}, {pipeline_mode = #tpu.pipeline_mode<synchronous>, transform_indices = @transform_7, window_bounds = array<i64: 16, 128>}]} {
    %c0 = arith.constant 0 : index
    %c0_0 = arith.constant 0 : index
    %0 = vector.load %arg2[%c0, %c0_0] : memref<16x128xf32, #tpu.memory_space<vmem>>, vector<16x128xf32>
    %c0_1 = arith.constant 0 : index
    %c0_2 = arith.constant 0 : index
    %1 = vector.load %arg1[%c0_1, %c0_2] : memref<16x128xbf16, #tpu.memory_space<vmem>>, vector<16x128xbf16>
    %c0_3 = arith.constant 0 : index
    %c0_4 = arith.constant 0 : index
    %2 = vector.load %arg3[%c0_3, %c0_4] : memref<128x384xbf16, #tpu.memory_space<vmem>>, vector<128x384xbf16>
    %cst = arith.constant dense<0.000000e+00> : vector<16x384xf32>
    %3 = tpu.matmul %1, %2, %cst {dimension_numbers = #tpu.dot_dimension_numbers<[1], [0], [0], [1], [0, 0, 1, 1], [], []>} : vector<16x128xbf16>, vector<128x384xbf16>, vector<16x384xf32> -> vector<16x384xf32>
    %c0_5 = arith.constant 0 : index
    %c0_6 = arith.constant 0 : index
    %4 = vector.load %arg5[%c0_5, %c0_6] : memref<1x384xf32, #tpu.memory_space<vmem>>, vector<1x384xf32>
    %5 = vector.broadcast %4 : vector<1x384xf32> to vector<16x384xf32>
    %6 = arith.addf %3, %5 : vector<16x384xf32>
    %7 = arith.truncf %0 : vector<16x128xf32> to vector<16x128xbf16>
    %c0_7 = arith.constant 0 : index
    %c0_8 = arith.constant 0 : index
    %8 = vector.load %arg4[%c0_7, %c0_8] : memref<128x384xbf16, #tpu.memory_space<vmem>>, vector<128x384xbf16>
    %cst_9 = arith.constant dense<0.000000e+00> : vector<16x384xf32>
    %9 = tpu.matmul %7, %8, %cst_9 {dimension_numbers = #tpu.dot_dimension_numbers<[1], [0], [0], [1], [0, 0, 1, 1], [], []>} : vector<16x128xbf16>, vector<128x384xbf16>, vector<16x384xf32> -> vector<16x384xf32>
    %10 = vector.extract_strided_slice %6 {offsets = [0, 0], sizes = [16, 128], strides = [1, 1]} : vector<16x384xf32> to vector<16x128xf32>
    %11 = vector.extract_strided_slice %9 {offsets = [0, 0], sizes = [16, 128], strides = [1, 1]} : vector<16x384xf32> to vector<16x128xf32>
    %12 = arith.addf %10, %11 : vector<16x128xf32>
    %13 = arith.negf %12 : vector<16x128xf32>
    %14 = math.exp %13 : vector<16x128xf32>
    %cst_10 = arith.constant 1.000000e+00 : f32
    %15 = vector.broadcast %cst_10 : f32 to vector<16x128xf32>
    %16 = arith.addf %15, %14 : vector<16x128xf32>
    %17 = arith.divf %15, %16 : vector<16x128xf32>
    %18 = vector.extract_strided_slice %6 {offsets = [0, 128], sizes = [16, 128], strides = [1, 1]} : vector<16x384xf32> to vector<16x128xf32>
    %19 = vector.extract_strided_slice %9 {offsets = [0, 128], sizes = [16, 128], strides = [1, 1]} : vector<16x384xf32> to vector<16x128xf32>
    %20 = arith.addf %18, %19 : vector<16x128xf32>
    %21 = arith.negf %20 : vector<16x128xf32>
    %22 = math.exp %21 : vector<16x128xf32>
    %cst_11 = arith.constant 1.000000e+00 : f32
    %23 = vector.broadcast %cst_11 : f32 to vector<16x128xf32>
    %24 = arith.addf %23, %22 : vector<16x128xf32>
    %25 = arith.divf %23, %24 : vector<16x128xf32>
    %26 = vector.extract_strided_slice %6 {offsets = [0, 256], sizes = [16, 128], strides = [1, 1]} : vector<16x384xf32> to vector<16x128xf32>
    %27 = vector.extract_strided_slice %9 {offsets = [0, 256], sizes = [16, 128], strides = [1, 1]} : vector<16x384xf32> to vector<16x128xf32>
    %c0_12 = arith.constant 0 : index
    %c0_13 = arith.constant 0 : index
    %28 = vector.load %arg6[%c0_12, %c0_13] : memref<1x128xf32, #tpu.memory_space<vmem>>, vector<1x128xf32>
    %29 = vector.broadcast %28 : vector<1x128xf32> to vector<16x128xf32>
    %30 = arith.addf %27, %29 : vector<16x128xf32>
    %31 = arith.mulf %17, %30 : vector<16x128xf32>
    %32 = arith.addf %26, %31 : vector<16x128xf32>
    %33 = math.tanh %32 : vector<16x128xf32>
    %34 = arith.subf %0, %33 : vector<16x128xf32>
    %35 = arith.mulf %25, %34 : vector<16x128xf32>
    %36 = arith.addf %33, %35 : vector<16x128xf32>
    %c0_14 = arith.constant 0 : index
    %c0_15 = arith.constant 0 : index
    %37 = vector.load %arg7[%c0_14, %c0_15] : memref<16x128xf32, #tpu.memory_space<vmem>>, vector<16x128xf32>
    tpu.vector_store %arg7[%c0_14, %c0_15], %36 {strides = array<i32>} : memref<16x128xf32, #tpu.memory_space<vmem>>, vector<16x128xf32>,
    %38 = arith.truncf %36 : vector<16x128xf32> to vector<16x128xbf16>
    %c0_16 = arith.constant 0 : index
    %c0_17 = arith.constant 0 : index
    %39 = vector.load %arg8[%c0_16, %c0_17] : memref<16x128xbf16, #tpu.memory_space<vmem>>, vector<16x128xbf16>
    tpu.vector_store %arg8[%c0_16, %c0_17], %38 {strides = array<i32>} : memref<16x128xbf16, #tpu.memory_space<vmem>>, vector<16x128xbf16>,
    return
  }
  func.func @transform_0(%arg0: i32) -> (i32, i32) {
    %c0_i32 = arith.constant 0 : i32
    %c0_i32_0 = arith.constant 0 : i32
    %c0_i32_1 = arith.constant 0 : i32
    return %c0_i32, %c0_i32_0 : i32, i32
  }
  func.func @transform_1(%arg0: i32) -> (i32, i32) {
    %c0_i32 = arith.constant 0 : i32
    %c0_i32_0 = arith.constant 0 : i32
    %c0_i32_1 = arith.constant 0 : i32
    return %c0_i32, %c0_i32_0 : i32, i32
  }
  func.func @transform_2(%arg0: i32) -> (i32, i32) {
    %c0_i32 = arith.constant 0 : i32
    %c0_i32_0 = arith.constant 0 : i32
    %c0_i32_1 = arith.constant 0 : i32
    return %c0_i32, %c0_i32_0 : i32, i32
  }
  func.func @transform_3(%arg0: i32) -> (i32, i32) {
    %c0_i32 = arith.constant 0 : i32
    %c0_i32_0 = arith.constant 0 : i32
    %c0_i32_1 = arith.constant 0 : i32
    return %c0_i32, %c0_i32_0 : i32, i32
  }
  func.func @transform_4(%arg0: i32) -> (i32, i32) {
    %c0_i32 = arith.constant 0 : i32
    %c0_i32_0 = arith.constant 0 : i32
    %c0_i32_1 = arith.constant 0 : i32
    return %c0_i32, %c0_i32_0 : i32, i32
  }
  func.func @transform_5(%arg0: i32) -> (i32, i32) {
    %c0_i32 = arith.constant 0 : i32
    %c0_i32_0 = arith.constant 0 : i32
    %c0_i32_1 = arith.constant 0 : i32
    return %c0_i32, %c0_i32_0 : i32, i32
  }
  func.func @transform_6(%arg0: i32) -> (i32, i32) {
    %c0_i32 = arith.constant 0 : i32
    %c0_i32_0 = arith.constant 0 : i32
    %c0_i32_1 = arith.constant 0 : i32
    return %c0_i32, %c0_i32_0 : i32, i32
  }
  func.func @transform_7(%arg0: i32) -> (i32, i32) {
    %c0_i32 = arith.constant 0 : i32
    %c0_i32_0 = arith.constant 0 : i32
    %c0_i32_1 = arith.constant 0 : i32
    return %c0_i32, %c0_i32_0 : i32, i32
  }
}

</mosaic_0001>

<llo_original>
// kernel: tpu_custom_call.1
$region0: #{tpu_custom_call.1}
  #allocation0 [shape = 'u32[]', space=smem, size = 0x4, offset = 0x4, fixed_abs, tag = 'smem constant byte address 0x4 - core index']
  #allocation1 [shape = 'u32[72,128]{1,0:T(1,128)}', space=vmem, size = 0x9000, scoped, tag = 'internal scratch']
  %s0 = inlined_call_operand.hbm [shape: bf16[16,128], index: 0, kind: input, shape index: {}]
  %s1 = inlined_call_operand.hbm [shape: f32[16,128], index: 1, kind: input, shape index: {}]
  %s2 = inlined_call_operand.hbm [shape: bf16[128,384], index: 2, kind: input, shape index: {}]
  %s3 = inlined_call_operand.hbm [shape: bf16[128,384], index: 3, kind: input, shape index: {}]
  %s4 = inlined_call_operand.vmem [shape: f32[1,384], index: 4, kind: input, shape index: {}]
  %s5 = inlined_call_operand.vmem [shape: f32[1,128], index: 5, kind: input, shape index: {}]
  %s6 = inlined_call_operand.hbm [shape: f32[16,128], index: 6, kind: output, shape index: {0}]
  %s7 = inlined_call_operand.hbm [shape: bf16[16,128], index: 7, kind: output, shape index: {1}]
  %8 = xla_tuple %s6, %s7
  %s9 = sld [smem:[#allocation0]]
  $region58: #{tpu_custom_call.1} parent=0
    _
  %s11 = ssub.s32 1, %s9
  %s12 = scalar_select 0, %s11, %s9
  $region1: #{tpu_custom_call.1} parent=0
    #allocation2 [shape = 'u8[4096]{0}', space=vmem, size = 0x1000, scoped, tag = 'input window, operand 0, single buffered']
    #allocation3 [shape = 's32[1]{0}', space=sflag, size = 0x4, scoped, tag = 'scoped memory for tpu_custom_call.1']
    #allocation4 [shape = 's32[1]{0}', space=sflag, size = 0x4, scoped, tag = 'scoped memory for tpu_custom_call.1']
    #allocation5 [shape = 'u8[8192]{0}', space=vmem, size = 0x2000, scoped, tag = 'input window, operand 1, single buffered']
    #allocation6 [shape = 's32[1]{0}', space=sflag, size = 0x4, scoped, tag = 'scoped memory for tpu_custom_call.1']
    #allocation7 [shape = 'u8[98304]{0}', space=vmem, size = 0x18000, scoped, tag = 'input window, operand 2, single buffered']
    #allocation8 [shape = 'u8[98304]{0}', space=vmem, size = 0x18000, scoped, tag = 'input window, operand 3, single buffered']
    #allocation9 [shape = 's32[1]{0}', space=sflag, size = 0x4, scoped, tag = 'scoped memory for tpu_custom_call.1']
    #allocation10 [shape = 'u8[8192]{0}', space=vmem, size = 0x2000, scoped, tag = 'output window, operand 0, single buffered']
    #allocation11 [shape = 'u8[4096]{0}', space=vmem, size = 0x1000, scoped, tag = 'output window, operand 1, single buffered']
    #allocation12 [shape = 's32[1]{0}', space=sflag, size = 0x4, scoped, tag = 'scoped memory for tpu_custom_call.1']
    %13 = vsyncpa [#allocation3], 0
    %14 = vsyncpa [#allocation6], 0
    %15 = vsyncpa [#allocation9], 0
    %16 = vsyncpa [#allocation4], 0
    %17 = vsyncpa [#allocation12], 0
    // Predicated region
    $region2: #{tpu_custom_call.1} parent=1 // pred_check
      _
    $region3: #{tpu_custom_call.1} parent=1 // pred_check_branch
      %19 = sbr.rel (0) target = $region5
    $region4: #{tpu_custom_call.1} parent=1 // pred_region
      %21 = vsyncadd [#allocation3], 0
      %s22 = sshll.u32 %s0, 4
      %s23 = int_to_ptr.hbm [resolvable:$true] %s22
      %s24 = sshll.u32 [#allocation2], 4
      %s25 = int_to_ptr.vmem [resolvable:$true] %s24
      %30 = dma.hbm_to_vmem [thread:$0]  %s23, 128, %s25, [#allocation3], 64, 64, 4
    $region5: #{tpu_custom_call.1} parent=1 // pred_fallthru
      _
    // Predicated region
    $region6: #{tpu_custom_call.1} parent=1 // pred_check
      _
    $region7: #{tpu_custom_call.1} parent=1 // pred_check_branch
      %32 = sbr.rel (0) target = $region9
    $region8: #{tpu_custom_call.1} parent=1 // pred_region
      %34 = vsyncadd [#allocation6], 0
      %s35 = sshll.u32 %s1, 4
      %s36 = int_to_ptr.hbm [resolvable:$true] %s35
      %s37 = sshll.u32 [#allocation5], 4
      %s38 = int_to_ptr.vmem [resolvable:$true] %s37
      %43 = dma.hbm_to_vmem [thread:$0]  %s36, 256, %s38, [#allocation6], 128, 128, 8
    $region9: #{tpu_custom_call.1} parent=1 // pred_fallthru
      _
    // Predicated region
    $region10: #{tpu_custom_call.1} parent=1 // pred_check
      _
    $region11: #{tpu_custom_call.1} parent=1 // pred_check_branch
      %45 = sbr.rel (0) target = $region13
    $region12: #{tpu_custom_call.1} parent=1 // pred_region
      %47 = vsyncadd [#allocation6], 0
      %s48 = sshll.u32 %s2, 4
      %s49 = int_to_ptr.hbm [resolvable:$true] %s48
      %s50 = sshll.u32 [#allocation7], 4
      %s51 = int_to_ptr.vmem [resolvable:$true] %s50
      %56 = dma.hbm_to_vmem [thread:$0]  %s49, 3072, %s51, [#allocation6], 192, 192, 12
    $region13: #{tpu_custom_call.1} parent=1 // pred_fallthru
      _
    // Predicated region
    $region14: #{tpu_custom_call.1} parent=1 // pred_check
      _
    $region15: #{tpu_custom_call.1} parent=1 // pred_check_branch
      %58 = sbr.rel (0) target = $region17
    $region16: #{tpu_custom_call.1} parent=1 // pred_region
      %60 = vsyncadd [#allocation9], 0
      %s61 = sshll.u32 %s3, 4
      %s62 = int_to_ptr.hbm [resolvable:$true] %s61
      %s63 = sshll.u32 [#allocation8], 4
      %s64 = int_to_ptr.vmem [resolvable:$true] %s63
      %69 = dma.hbm_to_vmem [thread:$0]  %s62, 3072, %s64, [#allocation9], 192, 192, 12
    $region17: #{tpu_custom_call.1} parent=1 // pred_fallthru
      _
    // Predicated region
    $region18: #{tpu_custom_call.1} parent=1 // pred_check
      _
    $region19: #{tpu_custom_call.1} parent=1 // pred_check_branch
      %71 = sbr.rel (0) target = $region21
    $region20: #{tpu_custom_call.1} parent=1 // pred_region
      _
    $region21: #{tpu_custom_call.1} parent=1 // pred_fallthru
      _
    // Predicated region
    $region22: #{tpu_custom_call.1} parent=1 // pred_check
      _
    $region23: #{tpu_custom_call.1} parent=1 // pred_check_branch
      %73 = sbr.rel (0) target = $region25
    $region24: #{tpu_custom_call.1} parent=1 // pred_region
      _
    $region25: #{tpu_custom_call.1} parent=1 // pred_fallthru
      _
    // Predicated region
    $region26: #{tpu_custom_call.1} parent=1 // pred_check
      _
    $region27: #{tpu_custom_call.1} parent=1 // pred_check_branch
      %75 = sbr.rel (0) target = $region29
    $region28: #{tpu_custom_call.1} parent=1 // pred_region
      %77 = dma.done [#allocation3], 128
    $region29: #{tpu_custom_call.1} parent=1 // pred_fallthru
      _
    // Predicated region
    $region30: #{tpu_custom_call.1} parent=1 // pred_check
      _
    $region31: #{tpu_custom_call.1} parent=1 // pred_check_branch
      %79 = sbr.rel (0) target = $region33
    $region32: #{tpu_custom_call.1} parent=1 // pred_region
      %81 = dma.done [#allocation6], 256
    $region33: #{tpu_custom_call.1} parent=1 // pred_fallthru
      _
    // Predicated region
    $region34: #{tpu_custom_call.1} parent=1 // pred_check
      _
    $region35: #{tpu_custom_call.1} parent=1 // pred_check_branch
      %83 = sbr.rel (0) target = $region37
    $region36: #{tpu_custom_call.1} parent=1 // pred_region
      %85 = dma.done [#allocation6], 3072
    $region37: #{tpu_custom_call.1} parent=1 // pred_fallthru
      _
    // Predicated region
    $region38: #{tpu_custom_call.1} parent=1 // pred_check
      _
    $region39: #{tpu_custom_call.1} parent=1 // pred_check_branch
      %87 = sbr.rel (0) target = $region41
    $region40: #{tpu_custom_call.1} parent=1 // pred_region
      %89 = dma.done [#allocation9], 3072
    $region41: #{tpu_custom_call.1} parent=1 // pred_fallthru
      _
    %v90 = vld [vmem:[#allocation5] sm:$0xff]
    %v91 = vld [vmem:[#allocation5 + $0x8] sm:$0xff]
    %v92 = vld [vmem:[#allocation2] sm:$0xf]
    %v93 = vld [vmem:[#allocation2 + $0x4] sm:$0xf]
    %v94 = vld [vmem:[#allocation7] sm:$0xff]
    %v95 = vld [vmem:[#allocation7 + $0x8] sm:$0xf]
    %v96 = vld [vmem:[#allocation7 + $0xc] sm:$0xff]
    %v97 = vld [vmem:[#allocation7 + $0x14] sm:$0xf]
    %v98 = vld [vmem:[#allocation7 + $0x18] sm:$0xff]
    %v99 = vld [vmem:[#allocation7 + $0x20] sm:$0xf]
    %v100 = vld [vmem:[#allocation7 + $0x24] sm:$0xff]
    %v101 = vld [vmem:[#allocation7 + $0x2c] sm:$0xf]
    %v102 = vld [vmem:[#allocation7 + $0x30] sm:$0xff]
    %v103 = vld [vmem:[#allocation7 + $0x38] sm:$0xf]
    %v104 = vld [vmem:[#allocation7 + $0x3c] sm:$0xff]
    %v105 = vld [vmem:[#allocation7 + $0x44] sm:$0xf]
    %v106 = vld [vmem:[#allocation7 + $0x48] sm:$0xff]
    %v107 = vld [vmem:[#allocation7 + $0x50] sm:$0xf]
    %v108 = vld [vmem:[#allocation7 + $0x54] sm:$0xff]
    %v109 = vld [vmem:[#allocation7 + $0x5c] sm:$0xf]
    %v110 = vld [vmem:[#allocation7 + $0x60] sm:$0xff]
    %v111 = vld [vmem:[#allocation7 + $0x68] sm:$0xf]
    %v112 = vld [vmem:[#allocation7 + $0x6c] sm:$0xff]
    %v113 = vld [vmem:[#allocation7 + $0x74] sm:$0xf]
    %v114 = vld [vmem:[#allocation7 + $0x78] sm:$0xff]
    %v115 = vld [vmem:[#allocation7 + $0x80] sm:$0xf]
    %v116 = vld [vmem:[#allocation7 + $0x84] sm:$0xff]
    %v117 = vld [vmem:[#allocation7 + $0x8c] sm:$0xf]
    %v118 = vld [vmem:[#allocation7 + $0x90] sm:$0xff]
    %v119 = vld [vmem:[#allocation7 + $0x98] sm:$0xf]
    %v120 = vld [vmem:[#allocation7 + $0x9c] sm:$0xff]
    %v121 = vld [vmem:[#allocation7 + $0xa4] sm:$0xf]
    %v122 = vld [vmem:[#allocation7 + $0xa8] sm:$0xff]
    %v123 = vld [vmem:[#allocation7 + $0xb0] sm:$0xf]
    %v124 = vld [vmem:[#allocation7 + $0xb4] sm:$0xff]
    %v125 = vld [vmem:[#allocation7 + $0xbc] sm:$0xf]
    %v126 = vld [vmem:[%s4] sm:$0x7]
    %v128 = vperm.slane %v126, 0
    %v129 = vperm.slane %v126, 1
    %v130 = vperm.slane %v126, 2
    %v136 = vunpack.c.l.b16 %v92
    %v137 = vunpack.c.l.b16 %v93
    %v138 = vpack.c.b16 %v137, %v136
    %v172 = vunpack.c.l.b16 %v94
    %v173 = vunpack.c.h.b16 %v94
    %v174 = vunpack.c.l.b16 %v95
    %v175 = vunpack.c.l.b16 %v96
    %v176 = vunpack.c.h.b16 %v96
    %v177 = vunpack.c.l.b16 %v97
    %v178 = vunpack.c.l.b16 %v98
    %v179 = vunpack.c.h.b16 %v98
    %v180 = vunpack.c.l.b16 %v99
    %v181 = vunpack.c.l.b16 %v100
    %v182 = vunpack.c.h.b16 %v100
    %v183 = vunpack.c.l.b16 %v101
    %v184 = vunpack.c.l.b16 %v102
    %v185 = vunpack.c.h.b16 %v102
    %v186 = vunpack.c.l.b16 %v103
    %v187 = vunpack.c.l.b16 %v104
    %v188 = vunpack.c.h.b16 %v104
    %v189 = vunpack.c.l.b16 %v105
    %v190 = vunpack.c.l.b16 %v106
    %v191 = vunpack.c.h.b16 %v106
    %v192 = vunpack.c.l.b16 %v107
    %v193 = vunpack.c.l.b16 %v108
    %v194 = vunpack.c.h.b16 %v108
    %v195 = vunpack.c.l.b16 %v109
    %v196 = vunpack.c.l.b16 %v110
    %v197 = vunpack.c.h.b16 %v110
    %v198 = vunpack.c.l.b16 %v111
    %v199 = vunpack.c.l.b16 %v112
    %v200 = vunpack.c.h.b16 %v112
    %v201 = vunpack.c.l.b16 %v113
    %v202 = vunpack.c.l.b16 %v114
    %v203 = vunpack.c.h.b16 %v114
    %v204 = vunpack.c.l.b16 %v115
    %v205 = vunpack.c.l.b16 %v116
    %v206 = vunpack.c.h.b16 %v116
    %v207 = vunpack.c.l.b16 %v117
    %v208 = vunpack.c.l.b16 %v118
    %v209 = vunpack.c.h.b16 %v118
    %v210 = vunpack.c.l.b16 %v119
    %v211 = vunpack.c.l.b16 %v120
    %v212 = vunpack.c.h.b16 %v120
    %v213 = vunpack.c.l.b16 %v121
    %v214 = vunpack.c.l.b16 %v122
    %v215 = vunpack.c.h.b16 %v122
    %v216 = vunpack.c.l.b16 %v123
    %v217 = vunpack.c.l.b16 %v124
    %v218 = vunpack.c.h.b16 %v124
    %v219 = vunpack.c.l.b16 %v125
    %v220 = vpack.c.b16 %v175, %v172
    %v221 = vpack.c.b16 %v176, %v173
    %v222 = vpack.c.b16 %v177, %v174
    %v223 = vpack.c.b16 %v181, %v178
    %v224 = vpack.c.b16 %v182, %v179
    %v225 = vpack.c.b16 %v183, %v180
    %v226 = vpack.c.b16 %v187, %v184
    %v227 = vpack.c.b16 %v188, %v185
    %v228 = vpack.c.b16 %v189, %v186
    %v229 = vpack.c.b16 %v193, %v190
    %v230 = vpack.c.b16 %v194, %v191
    %v231 = vpack.c.b16 %v195, %v192
    %v232 = vpack.c.b16 %v199, %v196
    %v233 = vpack.c.b16 %v200, %v197
    %v234 = vpack.c.b16 %v201, %v198
    %v235 = vpack.c.b16 %v205, %v202
    %v236 = vpack.c.b16 %v206, %v203
    %v237 = vpack.c.b16 %v207, %v204
    %v238 = vpack.c.b16 %v211, %v208
    %v239 = vpack.c.b16 %v212, %v209
    %v240 = vpack.c.b16 %v213, %v210
    %v241 = vpack.c.b16 %v217, %v214
    %v242 = vpack.c.b16 %v218, %v215
    %v243 = vpack.c.b16 %v219, %v216
    %268 = vmatpush.bf16.msra.mxu0 %v241
    %269 = vmatpush.bf16.msra.mxu0 %v238
    %270 = vmatpush.bf16.msra.mxu0 %v235
    %271 = vmatpush.bf16.msra.mxu0 %v232
    %272 = vmatpush.bf16.msra.mxu0 %v229
    %273 = vmatpush.bf16.msra.mxu0 %v226
    %274 = vmatpush.bf16.msra.mxu0 %v223
    %275 = vmatpush.bf16.msra.mxu0 %v220
    %276 = vmatmul.bf16.gmra.mxu0 %v138
    %v277 = vpop.f32.mrf.mxu0
    %v278 = vadd.f32 %v128, %v277
    %v279 = vpop.f32.mrf.mxu0
    %v280 = vadd.f32 %v128, %v279
    %281 = vdwg.mxu0
    %282 = vmatpush.bf16.msra.mxu0 %v242
    %283 = vmatpush.bf16.msra.mxu0 %v239
    %284 = vmatpush.bf16.msra.mxu0 %v236
    %285 = vmatpush.bf16.msra.mxu0 %v233
    %286 = vmatpush.bf16.msra.mxu0 %v230
    %287 = vmatpush.bf16.msra.mxu0 %v227
    %288 = vmatpush.bf16.msra.mxu0 %v224
    %289 = vmatpush.bf16.msra.mxu0 %v221
    %290 = vmatmul.bf16.gmra.mxu0 %v138
    %v291 = vpop.f32.mrf.mxu0
    %v292 = vadd.f32 %v129, %v291
    %v293 = vpop.f32.mrf.mxu0
    %v294 = vadd.f32 %v129, %v293
    %295 = vdwg.mxu0
    %296 = vmatpush.bf16.msra.mxu0 %v243
    %297 = vmatpush.bf16.msra.mxu0 %v240
    %298 = vmatpush.bf16.msra.mxu0 %v237
    %299 = vmatpush.bf16.msra.mxu0 %v234
    %300 = vmatpush.bf16.msra.mxu0 %v231
    %301 = vmatpush.bf16.msra.mxu0 %v228
    %302 = vmatpush.bf16.msra.mxu0 %v225
    %303 = vmatpush.bf16.msra.mxu0 %v222
    %304 = vmatmul.bf16.gmra.mxu0 %v138
    %v305 = vpop.f32.mrf.mxu0
    %v306 = vadd.f32 %v130, %v305
    %v307 = vpop.f32.mrf.mxu0
    %v308 = vadd.f32 %v130, %v307
    %309 = vdwg.mxu0
    %v310 = vpack.c.bf16 %v91, %v90
    %v311 = vld [vmem:[#allocation8] sm:$0xff]
    %v312 = vld [vmem:[#allocation8 + $0x8] sm:$0xf]
    %v313 = vld [vmem:[#allocation8 + $0xc] sm:$0xff]
    %v314 = vld [vmem:[#allocation8 + $0x14] sm:$0xf]
    %v315 = vld [vmem:[#allocation8 + $0x18] sm:$0xff]
    %v316 = vld [vmem:[#allocation8 + $0x20] sm:$0xf]
    %v317 = vld [vmem:[#allocation8 + $0x24] sm:$0xff]
    %v318 = vld [vmem:[#allocation8 + $0x2c] sm:$0xf]
    %v319 = vld [vmem:[#allocation8 + $0x30] sm:$0xff]
    %v320 = vld [vmem:[#allocation8 + $0x38] sm:$0xf]
    %v321 = vld [vmem:[#allocation8 + $0x3c] sm:$0xff]
    %v322 = vld [vmem:[#allocation8 + $0x44] sm:$0xf]
    %v323 = vld [vmem:[#allocation8 + $0x48] sm:$0xff]
    %v324 = vld [vmem:[#allocation8 + $0x50] sm:$0xf]
    %v325 = vld [vmem:[#allocation8 + $0x54] sm:$0xff]
    %v326 = vld [vmem:[#allocation8 + $0x5c] sm:$0xf]
    %v327 = vld [vmem:[#allocation8 + $0x60] sm:$0xff]
    %v328 = vld [vmem:[#allocation8 + $0x68] sm:$0xf]
    %v329 = vld [vmem:[#allocation8 + $0x6c] sm:$0xff]
    %v330 = vld [vmem:[#allocation8 + $0x74] sm:$0xf]
    %v331 = vld [vmem:[#allocation8 + $0x78] sm:$0xff]
    %v332 = vld [vmem:[#allocation8 + $0x80] sm:$0xf]
    %v333 = vld [vmem:[#allocation8 + $0x84] sm:$0xff]
    %v334 = vld [vmem:[#allocation8 + $0x8c] sm:$0xf]
    %v335 = vld [vmem:[#allocation8 + $0x90] sm:$0xff]
    %v336 = vld [vmem:[#allocation8 + $0x98] sm:$0xf]
    %v337 = vld [vmem:[#allocation8 + $0x9c] sm:$0xff]
    %v338 = vld [vmem:[#allocation8 + $0xa4] sm:$0xf]
    %v339 = vld [vmem:[#allocation8 + $0xa8] sm:$0xff]
    %v340 = vld [vmem:[#allocation8 + $0xb0] sm:$0xf]
    %v341 = vld [vmem:[#allocation8 + $0xb4] sm:$0xff]
    %v342 = vld [vmem:[#allocation8 + $0xbc] sm:$0xf]
    %v375 = vunpack.c.l.b16 %v311
    %v376 = vunpack.c.h.b16 %v311
    %v377 = vunpack.c.l.b16 %v312
    %v378 = vunpack.c.l.b16 %v313
    %v379 = vunpack.c.h.b16 %v313
    %v380 = vunpack.c.l.b16 %v314
    %v381 = vunpack.c.l.b16 %v315
    %v382 = vunpack.c.h.b16 %v315
    %v383 = vunpack.c.l.b16 %v316
    %v384 = vunpack.c.l.b16 %v317
    %v385 = vunpack.c.h.b16 %v317
    %v386 = vunpack.c.l.b16 %v318
    %v387 = vunpack.c.l.b16 %v319
    %v388 = vunpack.c.h.b16 %v319
    %v389 = vunpack.c.l.b16 %v320
    %v390 = vunpack.c.l.b16 %v321
    %v391 = vunpack.c.h.b16 %v321
    %v392 = vunpack.c.l.b16 %v322
    %v393 = vunpack.c.l.b16 %v323
    %v394 = vunpack.c.h.b16 %v323
    %v395 = vunpack.c.l.b16 %v324
    %v396 = vunpack.c.l.b16 %v325
    %v397 = vunpack.c.h.b16 %v325
    %v398 = vunpack.c.l.b16 %v326
    %v399 = vunpack.c.l.b16 %v327
    %v400 = vunpack.c.h.b16 %v327
    %v401 = vunpack.c.l.b16 %v328
    %v402 = vunpack.c.l.b16 %v329
    %v403 = vunpack.c.h.b16 %v329
    %v404 = vunpack.c.l.b16 %v330
    %v405 = vunpack.c.l.b16 %v331
    %v406 = vunpack.c.h.b16 %v331
    %v407 = vunpack.c.l.b16 %v332
    %v408 = vunpack.c.l.b16 %v333
    %v409 = vunpack.c.h.b16 %v333
    %v410 = vunpack.c.l.b16 %v334
    %v411 = vunpack.c.l.b16 %v335
    %v412 = vunpack.c.h.b16 %v335
    %v413 = vunpack.c.l.b16 %v336
    %v414 = vunpack.c.l.b16 %v337
    %v415 = vunpack.c.h.b16 %v337
    %v416 = vunpack.c.l.b16 %v338
    %v417 = vunpack.c.l.b16 %v339
    %v418 = vunpack.c.h.b16 %v339
    %v419 = vunpack.c.l.b16 %v340
    %v420 = vunpack.c.l.b16 %v341
    %v421 = vunpack.c.h.b16 %v341
    %v422 = vunpack.c.l.b16 %v342
    %v423 = vpack.c.b16 %v378, %v375
    %v424 = vpack.c.b16 %v379, %v376
    %v425 = vpack.c.b16 %v380, %v377
    %v426 = vpack.c.b16 %v384, %v381
    %v427 = vpack.c.b16 %v385, %v382
    %v428 = vpack.c.b16 %v386, %v383
    %v429 = vpack.c.b16 %v390, %v387
    %v430 = vpack.c.b16 %v391, %v388
    %v431 = vpack.c.b16 %v392, %v389
    %v432 = vpack.c.b16 %v396, %v393
    %v433 = vpack.c.b16 %v397, %v394
    %v434 = vpack.c.b16 %v398, %v395
    %v435 = vpack.c.b16 %v402, %v399
    %v436 = vpack.c.b16 %v403, %v400
    %v437 = vpack.c.b16 %v404, %v401
    %v438 = vpack.c.b16 %v408, %v405
    %v439 = vpack.c.b16 %v409, %v406
    %v440 = vpack.c.b16 %v410, %v407
    %v441 = vpack.c.b16 %v414, %v411
    %v442 = vpack.c.b16 %v415, %v412
    %v443 = vpack.c.b16 %v416, %v413
    %v444 = vpack.c.b16 %v420, %v417
    %v445 = vpack.c.b16 %v421, %v418
    %v446 = vpack.c.b16 %v422, %v419
    %471 = vmatpush.bf16.msra.mxu0 %v444
    %472 = vmatpush.bf16.msra.mxu0 %v441
    %473 = vmatpush.bf16.msra.mxu0 %v438
    %474 = vmatpush.bf16.msra.mxu0 %v435
    %475 = vmatpush.bf16.msra.mxu0 %v432
    %476 = vmatpush.bf16.msra.mxu0 %v429
    %477 = vmatpush.bf16.msra.mxu0 %v426
    %478 = vmatpush.bf16.msra.mxu0 %v423
    %479 = vmatmul.bf16.gmra.mxu0 %v310
    %v480 = vpop.f32.mrf.mxu0
    %v481 = vadd.f32 0.0, %v480
    %v482 = vpop.f32.mrf.mxu0
    %v483 = vadd.f32 0.0, %v482
    %484 = vdwg.mxu0
    %485 = vmatpush.bf16.msra.mxu0 %v445
    %486 = vmatpush.bf16.msra.mxu0 %v442
    %487 = vmatpush.bf16.msra.mxu0 %v439
    %488 = vmatpush.bf16.msra.mxu0 %v436
    %489 = vmatpush.bf16.msra.mxu0 %v433
    %490 = vmatpush.bf16.msra.mxu0 %v430
    %491 = vmatpush.bf16.msra.mxu0 %v427
    %492 = vmatpush.bf16.msra.mxu0 %v424
    %493 = vmatmul.bf16.gmra.mxu0 %v310
    %v494 = vpop.f32.mrf.mxu0
    %v495 = vadd.f32 0.0, %v494
    %v496 = vpop.f32.mrf.mxu0
    %v497 = vadd.f32 0.0, %v496
    %498 = vdwg.mxu0
    %499 = vmatpush.bf16.msra.mxu0 %v446
    %500 = vmatpush.bf16.msra.mxu0 %v443
    %501 = vmatpush.bf16.msra.mxu0 %v440
    %502 = vmatpush.bf16.msra.mxu0 %v437
    %503 = vmatpush.bf16.msra.mxu0 %v434
    %504 = vmatpush.bf16.msra.mxu0 %v431
    %505 = vmatpush.bf16.msra.mxu0 %v428
    %506 = vmatpush.bf16.msra.mxu0 %v425
    %507 = vmatmul.bf16.gmra.mxu0 %v310
    %v508 = vpop.f32.mrf.mxu0
    %v509 = vadd.f32 0.0, %v508
    %v510 = vpop.f32.mrf.mxu0
    %v511 = vadd.f32 0.0, %v510
    %512 = vdwg.mxu0
    %v513 = vadd.f32 %v278, %v481
    %v514 = vadd.f32 %v280, %v483
    %v515 = vxor.u32 %v513, 2147483648
    %v516 = vxor.u32 %v514, 2147483648
    %v517 = vmul.f32 %v515, 1.442695
    %v518 = vpow.pop %v517
    %v519 = vmul.f32 %v516, 1.442695
    %v520 = vpow.pop %v519
    %v521 = vadd.f32 %v518, 1.0
    %v522 = vadd.f32 %v520, 1.0
    %v523 = vrcp.pop %v521
    %v524 = vmul.f32 %v521, %v523
    %v525 = vsub.f32 1.0, %v524
    %v526 = vmul.f32 %v523, %v525
    %v527 = vadd.f32 %v523, %v526
    %vm528 = vweird.f32 %v521
    %vm529 = vweird.f32 %v523
    %vm530 = vmor %vm528, %vm529
    %v531 = vsel %vm530, %v523, %v527
    %v532 = vand.u32 2147483647, %v521
    %vm533 = vcmp.eq.f32.partialorder %v532, 8.507059e+37
    %v534 = vand.u32 %v521, 2147483648
    %v535 = vor.u32 1.1754944e-38, %v534
    %v536 = vsel %vm533, %v535, %v531
    %v537 = vmul.f32 1.0, %v536
    %v538 = vrcp.pop %v522
    %v539 = vmul.f32 %v522, %v538
    %v540 = vsub.f32 1.0, %v539
    %v541 = vmul.f32 %v538, %v540
    %v542 = vadd.f32 %v538, %v541
    %vm543 = vweird.f32 %v522
    %vm544 = vweird.f32 %v538
    %vm545 = vmor %vm543, %vm544
    %v546 = vsel %vm545, %v538, %v542
    %v547 = vand.u32 2147483647, %v522
    %vm548 = vcmp.eq.f32.partialorder %v547, 8.507059e+37
    %v549 = vand.u32 %v522, 2147483648
    %v550 = vor.u32 1.1754944e-38, %v549
    %v551 = vsel %vm548, %v550, %v546
    %v552 = vmul.f32 1.0, %v551
    %v553 = vadd.f32 %v292, %v495
    %v554 = vadd.f32 %v294, %v497
    %v555 = vxor.u32 %v553, 2147483648
    %v556 = vxor.u32 %v554, 2147483648
    %v557 = vmul.f32 %v555, 1.442695
    %v558 = vpow.pop %v557
    %v559 = vmul.f32 %v556, 1.442695
    %v560 = vpow.pop %v559
    %v561 = vadd.f32 %v558, 1.0
    %v562 = vadd.f32 %v560, 1.0
    %v563 = vrcp.pop %v561
    %v564 = vmul.f32 %v561, %v563
    %v565 = vsub.f32 1.0, %v564
    %v566 = vmul.f32 %v563, %v565
    %v567 = vadd.f32 %v563, %v566
    %vm568 = vweird.f32 %v561
    %vm569 = vweird.f32 %v563
    %vm570 = vmor %vm568, %vm569
    %v571 = vsel %vm570, %v563, %v567
    %v572 = vand.u32 2147483647, %v561
    %vm573 = vcmp.eq.f32.partialorder %v572, 8.507059e+37
    %v574 = vand.u32 %v561, 2147483648
    %v575 = vor.u32 1.1754944e-38, %v574
    %v576 = vsel %vm573, %v575, %v571
    %v577 = vmul.f32 1.0, %v576
    %v578 = vrcp.pop %v562
    %v579 = vmul.f32 %v562, %v578
    %v580 = vsub.f32 1.0, %v579
    %v581 = vmul.f32 %v578, %v580
    %v582 = vadd.f32 %v578, %v581
    %vm583 = vweird.f32 %v562
    %vm584 = vweird.f32 %v578
    %vm585 = vmor %vm583, %vm584
    %v586 = vsel %vm585, %v578, %v582
    %v587 = vand.u32 2147483647, %v562
    %vm588 = vcmp.eq.f32.partialorder %v587, 8.507059e+37
    %v589 = vand.u32 %v562, 2147483648
    %v590 = vor.u32 1.1754944e-38, %v589
    %v591 = vsel %vm588, %v590, %v586
    %v592 = vmul.f32 1.0, %v591
    %v593 = vld [vmem:[%s5] sm:$0x1]
    %v595 = vperm.slane %v593, 0
    %v597 = vadd.f32 %v509, %v595
    %v598 = vadd.f32 %v511, %v595
    %v599 = vmul.f32 %v537, %v597
    %v600 = vmul.f32 %v552, %v598
    %v601 = vadd.f32 %v306, %v599
    %v602 = vadd.f32 %v308, %v600
    %v603 = vtanh.pop %v601
    %v604 = vtanh.pop %v602
    %v605 = vsub.f32 %v90, %v603
    %v606 = vsub.f32 %v91, %v604
    %v607 = vmul.f32 %v577, %v605
    %v608 = vmul.f32 %v592, %v606
    %v609 = vadd.f32 %v603, %v607
    %v610 = vadd.f32 %v604, %v608
    %611 = vst [vmem:[#allocation10] sm:$0xff] %v609
    %612 = vst [vmem:[#allocation10 + $0x8] sm:$0xff] %v610
    %v613 = vpack.c.bf16 %v609, %v609
    %v614 = vpack.c.bf16 %v610, %v610
    %615 = vst [vmem:[#allocation11] sm:$0xf] %v613
    %616 = vst [vmem:[#allocation11 + $0x4] sm:$0xf] %v614
    // Predicated region
    $region42: #{tpu_custom_call.1} parent=1 // pred_check
      _
    $region43: #{tpu_custom_call.1} parent=1 // pred_check_branch
      %618 = sbr.rel (0) target = $region45
    $region44: #{tpu_custom_call.1} parent=1 // pred_region
      %620 = vsyncadd [#allocation4], 0
      %s621 = sshll.u32 [#allocation10], 4
      %s622 = int_to_ptr.vmem [resolvable:$true] %s621
      %s623 = sshll.u32 %s6, 4
      %s624 = int_to_ptr.hbm [resolvable:$true] %s623
      %629 = dma.vmem_to_hbm [thread:$0]  %s622, 256, %s624, [#allocation4], 128, 128, 8
    $region45: #{tpu_custom_call.1} parent=1 // pred_fallthru
      _
    // Predicated region
    $region46: #{tpu_custom_call.1} parent=1 // pred_check
      _
    $region47: #{tpu_custom_call.1} parent=1 // pred_check_branch
      %631 = sbr.rel (0) target = $region49
    $region48: #{tpu_custom_call.1} parent=1 // pred_region
      %633 = vsyncadd [#allocation12], 0
      %s634 = sshll.u32 [#allocation11], 4
      %s635 = int_to_ptr.vmem [resolvable:$true] %s634
      %s636 = sshll.u32 %s7, 4
      %s637 = int_to_ptr.hbm [resolvable:$true] %s636
      %642 = dma.vmem_to_hbm [thread:$0]  %s635, 128, %s637, [#allocation12], 64, 64, 4
    $region49: #{tpu_custom_call.1} parent=1 // pred_fallthru
      _
    // Predicated region
    $region50: #{tpu_custom_call.1} parent=1 // pred_check
      _
    $region51: #{tpu_custom_call.1} parent=1 // pred_check_branch
      %644 = sbr.rel (0) target = $region53
    $region52: #{tpu_custom_call.1} parent=1 // pred_region
      %646 = dma.done [#allocation4], 256
    $region53: #{tpu_custom_call.1} parent=1 // pred_fallthru
      _
    // Predicated region
    $region54: #{tpu_custom_call.1} parent=1 // pred_check
      _
    $region55: #{tpu_custom_call.1} parent=1 // pred_check_branch
      %648 = sbr.rel (0) target = $region57
    $region56: #{tpu_custom_call.1} parent=1 // pred_region
      %650 = dma.done [#allocation12], 128
    $region57: #{tpu_custom_call.1} parent=1 // pred_fallthru
      _
    %651 = vsyncpa [#allocation3], 1
    %652 = vsyncpa [#allocation6], 1
    %653 = vsyncpa [#allocation9], 1
    %654 = vsyncpa [#allocation4], 1
    %655 = vsyncpa [#allocation12], 1

</llo_original>
